<compile_context>
chip_gen: v7x
topology: tpu7x:2x2x1
jax: 0.10.0
libtpu: 0.0.40
codegen_flags: <defaults>
</compile_context>

<pallas_src>
import functools

import jax
import jax.numpy as jnp
from jax.experimental import pallas as pl
from jax.experimental.pallas import tpu as pltpu

_LANES = 128


def _round_up(x, m):
    return (x + m - 1) // m * m


def _make_cnn_kernel(TB, L, E, Gp, max_kh):
    TBL = TB * L

    def kernel(emb_ref, w_all_ref, biasmask_ref, wf_ref, fb_ref, out_ref):
        # (TB, L, E) -> (TB*L, E).  Shift/concat in f32 (safe, cheap: E-wide), matmul in the
        # weights' compute dtype (bf16 by default) with f32 accumulation on the MXU.
        x = emb_ref[...].astype(jnp.float32).reshape(TBL, E)

        # im2col: lane block dh holds x advanced by dh time steps (sublane roll over the flattened
        # batch*time axis).  Rows that wrap across batch elements inside the tile only ever land
        # at time steps t > L - kh_i, which the bias/mask add kills below.
        # NOTE: valid only for stride=1, padding=0 (the module's defaults).
        pieces = [x]
        for dh in range(1, max_kh):
            pieces.append(pltpu.roll(x, shift=(TBL - dh) % TBL, axis=0))   # z[r,:] = x[r+dh,:]
        xim = jnp.concatenate(pieces, axis=1) if max_kh > 1 else x         # (TBL, max_kh*E)

        # ONE MXU matmul for every conv filter and tap: K = max_kh*E, N = Gp (128-padded).
        y = jnp.dot(xim.astype(w_all_ref.dtype), w_all_ref[...],
                    preferred_element_type=jnp.float32)                    # (TBL, Gp) f32

        # Conv bias + validity folded into one add: invalid time steps (t > L - kh_i) and dead pad
        # lanes hold -1e30, so ReLU zeroes them.  Max-over-time then matches the reference because
        # ReLU output is >= 0 (would break if the activation were changed).
        act = jnp.maximum(y.reshape(TB, L, Gp) + biasmask_ref[...][None], 0.0)
        feats = jnp.max(act, axis=1)                                       # (TB, Gp) f32

        # Final Linear on the packed feature lanes (padded rows/cols of wf are zero) -> lane-dense
        # (TB, 128) store.
        out_ref[...] = jnp.dot(feats, wf_ref[...],
                               preferred_element_type=jnp.float32) + fb_ref[...]

    return kernel


def cnn_model_forward(token_ids, params, *, kernel_heights, out_channels, n_labels,
                      batch_tile=128, compute_dtype=jnp.bfloat16,
                      vmem_limit_bytes=None):
    """Forward pass equivalent to CNN_MODEL.forward (dropout is identity at inference).

    batch_tile / vmem_limit_bytes are per-generation knobs: v7x (64 MiB VMEM) -> keep batch_tile
    <= 128; v6e/v5e (128 MiB) can afford 256-512 for large batches.
    """
    emb_table = params["embedding"]
    _, E = emb_table.shape
    B, L = token_ids.shape

    C = out_channels
    n_convs = len(kernel_heights)
    max_kh = max(kernel_heights)
    assert max_kh <= L, "kernel height larger than sequence length"
    G = n_convs * C                       # real feature count (= len(kernel_heights) * out_channels)
    Gp = _round_up(G, _LANES)             # packed conv-output lanes, 128-padded (lane-dense)
    K = max_kh * E                        # im2col contraction depth
    PL = _round_up(n_labels, _LANES)      # padded logits lanes (lane-dense output store)

    # Batch tile: multiple of 8 sublanes; prefer >= 2 grid steps so the ("parallel",) batch grid
    # feeds both v7x TensorCores (when the batch is big enough to allow it).
    TB = max(8, min(_round_up(batch_tile, 8), _round_up(B, 8)))
    while TB > 8 and _round_up(B, TB) // TB < 2:
        TB = max(8, _round_up(TB // 2, 8))
    B_pad = _round_up(B, TB)

    # Pad the int32 ids (cheap) instead of concatenating a full-width f32 embedding slab.
    if B_pad != B:
        token_ids = jnp.pad(token_ids, ((0, B_pad - B), (0, 0)))

    # Embedding lookup (gather) stays in plain JAX glue; streamed to the kernel in compute_dtype.
    # TODO(synk): fuse the gather into the kernel (scalar-prefetch token_ids + resident/DMA table).
    emb = jnp.take(emb_table, token_ids, axis=0).astype(compute_dtype)     # (B_pad, L, E)

    # ---- host-side packing ----
    # w_all rows dh*E:(dh+1)*E, cols i*C:(i+1)*C hold tap dh of conv i (zero if dh >= kh_i).
    NEG = -1e30
    w_all = jnp.zeros((K, Gp), jnp.float32)
    biasmask = jnp.full((L, Gp), NEG, jnp.float32)
    for i, kh in enumerate(kernel_heights):
        for dh in range(kh):
            w_all = w_all.at[dh * E:(dh + 1) * E, i * C:(i + 1) * C].set(
                params["conv_w"][i][:, dh, :].astype(jnp.float32).T)       # (E, C)
        biasmask = biasmask.at[:L - kh + 1, i * C:(i + 1) * C].set(
            params["conv_b"][i].astype(jnp.float32)[None, :])              # l_out_i = L - kh + 1
    w_all = w_all.astype(compute_dtype)

    wf = jnp.zeros((Gp, PL), jnp.float32)
    wf = wf.at[:G, :n_labels].set(params["final_w"].astype(jnp.float32).T)  # torch Linear: (out, in)
    fb = jnp.zeros((1, PL), jnp.float32)
    fb = fb.at[0, :n_labels].set(params["final_b"].astype(jnp.float32))

    kernel = _make_cnn_kernel(TB, L, E, Gp, max_kh)

    out = pl.pallas_call(
        kernel,
        out_shape=jax.ShapeDtypeStruct((B_pad, PL), jnp.float32),
        grid_spec=pltpu.PrefetchScalarGridSpec(
            num_scalar_prefetch=0,
            grid=(B_pad // TB,),
            in_specs=[
                pl.BlockSpec((TB, L, E), lambda b: (b, 0, 0)),   # pipelined embedding tiles
                pl.BlockSpec((K, Gp), lambda b: (0, 0)),         # resident im2col filter matrix
                pl.BlockSpec((L, Gp), lambda b: (0, 0)),         # bias + validity mask (fused)
                pl.BlockSpec((Gp, PL), lambda b: (0, 0)),        # padded final Linear weight
                pl.BlockSpec((1, PL), lambda b: (0, 0)),         # padded final Linear bias
            ],
            out_specs=pl.BlockSpec((TB, PL), lambda b: (b, 0)),
        ),
        compiler_params=pltpu.CompilerParams(
            dimension_semantics=("parallel",),                   # pipelined + megacore sharding
            vmem_limit_bytes=vmem_limit_bytes,                   # None -> compiler default
        ),
    )(emb, w_all, biasmask, wf, fb)

    return out[:B, :n_labels]


def _reference_forward(token_ids, params, *, kernel_heights, out_channels, n_labels):
    """Pure-JAX reference mirroring the PyTorch forward (eval mode)."""
    emb = jnp.take(params["embedding"], token_ids, axis=0).astype(jnp.float32)  # (B, L, E)
    B, L, _ = emb.shape
    feats = []
    for i, kh in enumerate(kernel_heights):
        w = params["conv_w"][i]  # (C, kh, E)
        l_out = L - kh + 1
        acc = jnp.zeros((B, l_out, out_channels), jnp.float32)
        for dh in range(kh):
            acc = acc + jnp.einsum("ble,ce->blc", emb[:, dh:dh + l_out, :], w[:, dh, :])
        acc = acc + params["conv_b"][i][None, None, :]
        act = jnp.maximum(acc, 0.0)
        feats.append(jnp.max(act, axis=1))
    all_out = jnp.concatenate(feats, axis=1)
    return all_out @ params["final_w"].T + params["final_b"][None, :]


if __name__ == "__main__":
    # Small shapes consistent with the module.
    vocab_size = 64
    embedding_dim = 32          # args.embedding_dim
    kernel_heights = (2, 3, 4)  # args.kernel_heights
    out_channels = 8            # args.out_channels  (in_channels = 1, stride = 1, padding = 0)
    n_labels = 2
    batch, seq_len = 2, 16

    key = jax.random.PRNGKey(0)
    k_emb, k_ids, k_fw, k_fb, *k_convs = jax.random.split(key, 4 + 2 * len(kernel_heights))

    params = {
        "embedding": jax.random.normal(k_emb, (vocab_size, embedding_dim), jnp.float32) * 0.1,
        "conv_w": [
            jax.random.normal(k_convs[2 * i], (out_channels, kh, embedding_dim), jnp.float32) * 0.1
            for i, kh in enumerate(kernel_heights)
        ],
        "conv_b": [
            jax.random.normal(k_convs[2 * i + 1], (out_channels,), jnp.float32) * 0.1
            for i in range(len(kernel_heights))
        ],
        # torch.nn.Linear layout: (out_features, in_features) = (n_labels, len(kh)*C)
        "final_w": jax.random.normal(
            k_fw, (n_labels, len(kernel_heights) * out_channels), jnp.float32) * 0.1,
        "final_b": jax.random.normal(k_fb, (n_labels,), jnp.float32) * 0.1,
    }

    token_ids = jax.random.randint(k_ids, (batch, seq_len), 0, vocab_size, dtype=jnp.int32)

    fwd = functools.partial(
        cnn_model_forward,
        kernel_heights=kernel_heights,
        out_channels=out_channels,
        n_labels=n_labels,
    )

    ref = _reference_forward(
        token_ids, params,
        kernel_heights=kernel_heights, out_channels=out_channels, n_labels=n_labels,
    )

    # Recommended default: bf16 streamed embeddings / filters, f32 accumulation.
    logits_bf16 = jax.block_until_ready(fwd(token_ids, params))
    assert logits_bf16.shape == (batch, n_labels)
    err_bf16 = float(jnp.max(jnp.abs(logits_bf16 - ref)))
    assert jnp.allclose(logits_bf16, ref, atol=1e-2, rtol=1e-2), err_bf16

    # f32 path matches the PyTorch module's numerics tightly.
    logits_f32 = jax.block_until_ready(fwd(token_ids, params, compute_dtype=jnp.float32))
    err_f32 = float(jnp.max(jnp.abs(logits_f32 - ref)))
    assert jnp.allclose(logits_f32, ref, atol=1e-3, rtol=1e-3), err_f32

    print("KERNEL_OK")
</pallas_src>

<mosaic_0001>
module attributes {stable_mosaic.version = 11 : i64} {
  func.func @kernel(%arg0: i32, %arg1: memref<8x16x32xbf16, #tpu.memory_space<vmem>>, %arg2: memref<128x128xbf16, #tpu.memory_space<vmem>>, %arg3: memref<16x128xf32, #tpu.memory_space<vmem>>, %arg4: memref<128x128xf32, #tpu.memory_space<vmem>>, %arg5: memref<1x128xf32, #tpu.memory_space<vmem>>, %arg6: memref<8x128xf32, #tpu.memory_space<vmem>>) attributes {dimension_semantics = [#tpu.dimension_semantics<parallel>], iteration_bounds = array<i64: 1>, scalar_prefetch = 0 : i64, scratch_operands = 0 : i64, tpu.core_type = #tpu.core_type<tc>, window_params = [{transform_indices = @transform_0, window_bounds = array<i64: 8, 16, 32>}, {pipeline_mode = #tpu.pipeline_mode<synchronous>, transform_indices = @transform_1, window_bounds = array<i64: 128, 128>}, {pipeline_mode = #tpu.pipeline_mode<synchronous>, transform_indices = @transform_2, window_bounds = array<i64: 16, 128>}, {pipeline_mode = #tpu.pipeline_mode<synchronous>, transform_indices = @transform_3, window_bounds = array<i64: 128, 128>}, {pipeline_mode = #tpu.pipeline_mode<synchronous>, transform_indices = @transform_4, window_bounds = array<i64: 1, 128>}, {transform_indices = @transform_5, window_bounds = array<i64: 8, 128>}]} {
    %c0 = arith.constant 0 : index
    %c0_0 = arith.constant 0 : index
    %c0_1 = arith.constant 0 : index
    %0 = vector.load %arg1[%c0, %c0_0, %c0_1] : memref<8x16x32xbf16, #tpu.memory_space<vmem>>, vector<8x16x32xbf16>
    %1 = arith.extf %0 : vector<8x16x32xbf16> to vector<8x16x32xf32>
    %2 = vector.shape_cast %1 : vector<8x16x32xf32> to vector<128x32xf32>
    %c127_i32 = arith.constant 127 : i32
    %3 = tpu.dynamic_rotate %2 by %c127_i32 dim 0 : vector<128x32xf32>, i32 -> vector<128x32xf32>
    %c126_i32 = arith.constant 126 : i32
    %4 = tpu.dynamic_rotate %2 by %c126_i32 dim 0 : vector<128x32xf32>, i32 -> vector<128x32xf32>
    %c125_i32 = arith.constant 125 : i32
    %5 = tpu.dynamic_rotate %2 by %c125_i32 dim 0 : vector<128x32xf32>, i32 -> vector<128x32xf32>
    %6 = tpu.concatenate %2, %3, %4, %5 in 1 : vector<128x32xf32>, vector<128x32xf32>, vector<128x32xf32>, vector<128x32xf32> -> vector<128x128xf32>
    %7 = arith.truncf %6 : vector<128x128xf32> to vector<128x128xbf16>
    %c0_2 = arith.constant 0 : index
    %c0_3 = arith.constant 0 : index
    %8 = vector.load %arg2[%c0_2, %c0_3] : memref<128x128xbf16, #tpu.memory_space<vmem>>, vector<128x128xbf16>
    %cst = arith.constant dense<0.000000e+00> : vector<128x128xf32>
    %9 = tpu.matmul %7, %8, %cst {dimension_numbers = #tpu.dot_dimension_numbers<[1], [0], [0], [1], [0, 0, 1, 1], [], []>} : vector<128x128xbf16>, vector<128x128xbf16>, vector<128x128xf32> -> vector<128x128xf32>
    %10 = vector.shape_cast %9 : vector<128x128xf32> to vector<8x16x128xf32>
    %c0_4 = arith.constant 0 : index
    %c0_5 = arith.constant 0 : index
    %11 = vector.load %arg3[%c0_4, %c0_5] : memref<16x128xf32, #tpu.memory_space<vmem>>, vector<16x128xf32>
    %12 = vector.shape_cast %11 : vector<16x128xf32> to vector<1x16x128xf32>
    %13 = vector.broadcast %12 : vector<1x16x128xf32> to vector<8x16x128xf32>
    %14 = arith.addf %10, %13 : vector<8x16x128xf32>
    %cst_6 = arith.constant 0.000000e+00 : f32
    %15 = vector.broadcast %cst_6 : f32 to vector<8x16x128xf32>
    %16 = arith.maximumf %14, %15 : vector<8x16x128xf32>
    %cst_7 = arith.constant dense<0xFF800000> : vector<8x128xf32>
    %17 = vector.multi_reduction <maximumf>, %16, %cst_7 [1] : vector<8x16x128xf32> to vector<8x128xf32>
    %c0_8 = arith.constant 0 : index
    %c0_9 = arith.constant 0 : index
    %18 = vector.load %arg4[%c0_8, %c0_9] : memref<128x128xf32, #tpu.memory_space<vmem>>, vector<128x128xf32>
    %cst_10 = arith.constant dense<0.000000e+00> : vector<8x128xf32>
    %19 = tpu.matmul %17, %18, %cst_10 {dimension_numbers = #tpu.dot_dimension_numbers<[1], [0], [0], [1], [0, 0, 1, 1], [], []>} : vector<8x128xf32>, vector<128x128xf32>, vector<8x128xf32> -> vector<8x128xf32>
    %c0_11 = arith.constant 0 : index
    %c0_12 = arith.constant 0 : index
    %20 = vector.load %arg5[%c0_11, %c0_12] : memref<1x128xf32, #tpu.memory_space<vmem>>, vector<1x128xf32>
    %21 = vector.broadcast %20 : vector<1x128xf32> to vector<8x128xf32>
    %22 = arith.addf %19, %21 : vector<8x128xf32>
    %c0_13 = arith.constant 0 : index
    %c0_14 = arith.constant 0 : index
    %23 = vector.load %arg6[%c0_13, %c0_14] : memref<8x128xf32, #tpu.memory_space<vmem>>, vector<8x128xf32>
    tpu.vector_store %arg6[%c0_13, %c0_14], %22 {strides = array<i32>} : memref<8x128xf32, #tpu.memory_space<vmem>>, vector<8x128xf32>,
    return
  }
  func.func @transform_0(%arg0: i32) -> (i32, i32, i32) {
    %c0_i32 = arith.constant 0 : i32
    %c0_i32_0 = arith.constant 0 : i32
    %c0_i32_1 = arith.constant 0 : i32
    return %arg0, %c0_i32, %c0_i32_0 : i32, i32, i32
  }
  func.func @transform_1(%arg0: i32) -> (i32, i32) {
    %c0_i32 = arith.constant 0 : i32
    %c0_i32_0 = arith.constant 0 : i32
    %c0_i32_1 = arith.constant 0 : i32
    return %c0_i32, %c0_i32_0 : i32, i32
  }
  func.func @transform_2(%arg0: i32) -> (i32, i32) {
    %c0_i32 = arith.constant 0 : i32
    %c0_i32_0 = arith.constant 0 : i32
    %c0_i32_1 = arith.constant 0 : i32
    return %c0_i32, %c0_i32_0 : i32, i32
  }
  func.func @transform_3(%arg0: i32) -> (i32, i32) {
    %c0_i32 = arith.constant 0 : i32
    %c0_i32_0 = arith.constant 0 : i32
    %c0_i32_1 = arith.constant 0 : i32
    return %c0_i32, %c0_i32_0 : i32, i32
  }
  func.func @transform_4(%arg0: i32) -> (i32, i32) {
    %c0_i32 = arith.constant 0 : i32
    %c0_i32_0 = arith.constant 0 : i32
    %c0_i32_1 = arith.constant 0 : i32
    return %c0_i32, %c0_i32_0 : i32, i32
  }
  func.func @transform_5(%arg0: i32) -> (i32, i32) {
    %c0_i32 = arith.constant 0 : i32
    %c0_i32_0 = arith.constant 0 : i32
    return %arg0, %c0_i32 : i32, i32
  }
}

</mosaic_0001>

<llo_original>
// kernel: tpu_custom_call.1
$region0: #{tpu_custom_call.1}
  #allocation0 [shape = 'u32[]', space=smem, size = 0x4, offset = 0x4, fixed_abs, tag = 'smem constant byte address 0x4 - core index']
  #allocation1 [shape = 'u32[144,128]{1,0:T(1,128)}', space=vmem, size = 0x12000, scoped, tag = 'internal scratch']
  %s0 = inlined_call_operand.hbm [shape: bf16[8,16,32], index: 0, kind: input, shape index: {}]
  %s1 = inlined_call_operand.hbm [shape: bf16[128,128], index: 1, kind: input, shape index: {}]
  %s2 = inlined_call_operand.hbm [shape: f32[16,128], index: 2, kind: input, shape index: {}]
  %s3 = inlined_call_operand.hbm [shape: f32[128,128], index: 3, kind: input, shape index: {}]
  %s4 = inlined_call_operand.vmem [shape: f32[1,128], index: 4, kind: input, shape index: {}]
  %s5 = inlined_call_operand.hbm [shape: f32[8,128], index: 5, kind: output, shape index: {}]
  %s6 = sld [smem:[#allocation0]]
  $region46: #{tpu_custom_call.1} parent=0
    _
  %s8 = ssub.s32 1, %s6
  %s9 = scalar_select 0, %s8, %s6
  $region1: #{tpu_custom_call.1} parent=0
    #allocation2 [shape = 'u8[32768]{0}', space=vmem, size = 0x8000, scoped, tag = 'input window, operand 0, single buffered']
    #allocation3 [shape = 's32[1]{0}', space=sflag, size = 0x4, scoped, tag = 'scoped memory for tpu_custom_call.1']
    #allocation4 [shape = 's32[1]{0}', space=sflag, size = 0x4, scoped, tag = 'scoped memory for tpu_custom_call.1']
    #allocation5 [shape = 'u8[32768]{0}', space=vmem, size = 0x8000, scoped, tag = 'input window, operand 1, single buffered']
    #allocation6 [shape = 's32[1]{0}', space=sflag, size = 0x4, scoped, tag = 'scoped memory for tpu_custom_call.1']
    #allocation7 [shape = 'u8[8192]{0}', space=vmem, size = 0x2000, scoped, tag = 'input window, operand 2, single buffered']
    #allocation8 [shape = 'u8[65536]{0}', space=vmem, size = 0x10000, scoped, tag = 'input window, operand 3, single buffered']
    #allocation9 [shape = 's32[1]{0}', space=sflag, size = 0x4, scoped, tag = 'scoped memory for tpu_custom_call.1']
    #allocation10 [shape = 'u8[4096]{0}', space=vmem, size = 0x1000, scoped, tag = 'output window, operand 0, single buffered']
    %10 = vsyncpa [#allocation3], 0
    %11 = vsyncpa [#allocation6], 0
    %12 = vsyncpa [#allocation9], 0
    %13 = vsyncpa [#allocation4], 0
    // Predicated region
    $region2: #{tpu_custom_call.1} parent=1 // pred_check
      _
    $region3: #{tpu_custom_call.1} parent=1 // pred_check_branch
      %15 = sbr.rel (0) target = $region5
    $region4: #{tpu_custom_call.1} parent=1 // pred_region
      %s17 = ssub.s32 1024, 1024
      %18 = vsyncadd [#allocation3], %s17
      %s19 = sshll.u32 [#allocation2], 4
      %s20 = int_to_ptr.vmem [resolvable:$true] %s19
      %25 = dma.hbm_to_vmem [thread:$0]  %s0, 1024, %s20, [#allocation3], 64, 64, 4
    $region5: #{tpu_custom_call.1} parent=1 // pred_fallthru
      _
    // Predicated region
    $region6: #{tpu_custom_call.1} parent=1 // pred_check
      _
    $region7: #{tpu_custom_call.1} parent=1 // pred_check_branch
      %27 = sbr.rel (0) target = $region9
    $region8: #{tpu_custom_call.1} parent=1 // pred_region
      %s29 = ssub.s32 1024, 1024
      %30 = vsyncadd [#allocation6], %s29
      %s31 = sshll.u32 [#allocation5], 4
      %s32 = int_to_ptr.vmem [resolvable:$true] %s31
      %37 = dma.hbm_to_vmem [thread:$0]  %s1, 1024, %s32, [#allocation6], 64, 64, 4
    $region9: #{tpu_custom_call.1} parent=1 // pred_fallthru
      _
    // Predicated region
    $region10: #{tpu_custom_call.1} parent=1 // pred_check
      _
    $region11: #{tpu_custom_call.1} parent=1 // pred_check_branch
      %39 = sbr.rel (0) target = $region13
    $region12: #{tpu_custom_call.1} parent=1 // pred_region
      %s41 = ssub.s32 256, 256
      %42 = vsyncadd [#allocation6], %s41
      %s43 = sshll.u32 [#allocation7], 4
      %s44 = int_to_ptr.vmem [resolvable:$true] %s43
      %49 = dma.hbm_to_vmem [thread:$0]  %s2, 256, %s44, [#allocation6], 128, 128, 8
    $region13: #{tpu_custom_call.1} parent=1 // pred_fallthru
      _
    // Predicated region
    $region14: #{tpu_custom_call.1} parent=1 // pred_check
      _
    $region15: #{tpu_custom_call.1} parent=1 // pred_check_branch
      %51 = sbr.rel (0) target = $region17
    $region16: #{tpu_custom_call.1} parent=1 // pred_region
      %s53 = ssub.s32 2048, 2048
      %54 = vsyncadd [#allocation9], %s53
      %s55 = sshll.u32 [#allocation8], 4
      %s56 = int_to_ptr.vmem [resolvable:$true] %s55
      %61 = dma.hbm_to_vmem [thread:$0]  %s3, 2048, %s56, [#allocation9], 128, 128, 8
    $region17: #{tpu_custom_call.1} parent=1 // pred_fallthru
      _
    // Predicated region
    $region18: #{tpu_custom_call.1} parent=1 // pred_check
      _
    $region19: #{tpu_custom_call.1} parent=1 // pred_check_branch
      %63 = sbr.rel (0) target = $region21
    $region20: #{tpu_custom_call.1} parent=1 // pred_region
      _
    $region21: #{tpu_custom_call.1} parent=1 // pred_fallthru
      _
    // Predicated region
    $region22: #{tpu_custom_call.1} parent=1 // pred_check
      _
    $region23: #{tpu_custom_call.1} parent=1 // pred_check_branch
      %65 = sbr.rel (0) target = $region25
    $region24: #{tpu_custom_call.1} parent=1 // pred_region
      %66 = dma.done [#allocation3], 1024
    $region25: #{tpu_custom_call.1} parent=1 // pred_fallthru
      _
    // Predicated region
    $region26: #{tpu_custom_call.1} parent=1 // pred_check
      _
    $region27: #{tpu_custom_call.1} parent=1 // pred_check_branch
      %68 = sbr.rel (0) target = $region29
    $region28: #{tpu_custom_call.1} parent=1 // pred_region
      %69 = dma.done [#allocation6], 1024
    $region29: #{tpu_custom_call.1} parent=1 // pred_fallthru
      _
    // Predicated region
    $region30: #{tpu_custom_call.1} parent=1 // pred_check
      _
    $region31: #{tpu_custom_call.1} parent=1 // pred_check_branch
      %71 = sbr.rel (0) target = $region33
    $region32: #{tpu_custom_call.1} parent=1 // pred_region
      %72 = dma.done [#allocation6], 256
    $region33: #{tpu_custom_call.1} parent=1 // pred_fallthru
      _
    // Predicated region
    $region34: #{tpu_custom_call.1} parent=1 // pred_check
      _
    $region35: #{tpu_custom_call.1} parent=1 // pred_check_branch
      %74 = sbr.rel (0) target = $region37
    $region36: #{tpu_custom_call.1} parent=1 // pred_region
      %75 = dma.done [#allocation9], 2048
    $region37: #{tpu_custom_call.1} parent=1 // pred_fallthru
      _
    %v77 = vld [vmem:[#allocation2] sm:$0xf]
    %v78 = vld [vmem:[#allocation2 + $0x4] sm:$0xf]
    %v79 = vld [vmem:[#allocation2 + $0x8] sm:$0xf]
    %v80 = vld [vmem:[#allocation2 + $0xc] sm:$0xf]
    %v81 = vld [vmem:[#allocation2 + $0x10] sm:$0xf]
    %v82 = vld [vmem:[#allocation2 + $0x14] sm:$0xf]
    %v83 = vld [vmem:[#allocation2 + $0x18] sm:$0xf]
    %v84 = vld [vmem:[#allocation2 + $0x1c] sm:$0xf]
    %v85 = vld [vmem:[#allocation2 + $0x20] sm:$0xf]
    %v86 = vld [vmem:[#allocation2 + $0x24] sm:$0xf]
    %v87 = vld [vmem:[#allocation2 + $0x28] sm:$0xf]
    %v88 = vld [vmem:[#allocation2 + $0x2c] sm:$0xf]
    %v89 = vld [vmem:[#allocation2 + $0x30] sm:$0xf]
    %v90 = vld [vmem:[#allocation2 + $0x34] sm:$0xf]
    %v91 = vld [vmem:[#allocation2 + $0x38] sm:$0xf]
    %v92 = vld [vmem:[#allocation2 + $0x3c] sm:$0xf]
    %v93 = vunpack.c.l.bf16 %v77
    %v94 = vunpack.c.l.bf16 %v78
    %v95 = vunpack.c.l.bf16 %v79
    %v96 = vunpack.c.l.bf16 %v80
    %v97 = vunpack.c.l.bf16 %v81
    %v98 = vunpack.c.l.bf16 %v82
    %v99 = vunpack.c.l.bf16 %v83
    %v100 = vunpack.c.l.bf16 %v84
    %v101 = vunpack.c.l.bf16 %v85
    %v102 = vunpack.c.l.bf16 %v86
    %v103 = vunpack.c.l.bf16 %v87
    %v104 = vunpack.c.l.bf16 %v88
    %v105 = vunpack.c.l.bf16 %v89
    %v106 = vunpack.c.l.bf16 %v90
    %v107 = vunpack.c.l.bf16 %v91
    %v108 = vunpack.c.l.bf16 %v92
    %v109 = vrot.slane %v93, 1
    %v110 = vrot.slane %v94, 1
    %v111 = vrot.slane %v95, 1
    %v112 = vrot.slane %v96, 1
    %v113 = vrot.slane %v97, 1
    %v114 = vrot.slane %v98, 1
    %v115 = vrot.slane %v99, 1
    %v116 = vrot.slane %v100, 1
    %v117 = vrot.slane %v101, 1
    %v118 = vrot.slane %v102, 1
    %v119 = vrot.slane %v103, 1
    %v120 = vrot.slane %v104, 1
    %v121 = vrot.slane %v105, 1
    %v122 = vrot.slane %v106, 1
    %v123 = vrot.slane %v107, 1
    %v124 = vrot.slane %v108, 1
    %v125 = vlaneseq
    %v126 = vshrl.u32 %v125, 7
    %vm127 = vcmp.lt.s32.totalorder %v126, 7
    %v128 = vsel %vm127, %v123, %v124
    %v129 = vsel %vm127, %v122, %v123
    %v130 = vsel %vm127, %v121, %v122
    %v131 = vsel %vm127, %v120, %v121
    %v132 = vsel %vm127, %v119, %v120
    %v133 = vsel %vm127, %v118, %v119
    %v134 = vsel %vm127, %v117, %v118
    %v135 = vsel %vm127, %v116, %v117
    %v136 = vsel %vm127, %v115, %v116
    %v137 = vsel %vm127, %v114, %v115
    %v138 = vsel %vm127, %v113, %v114
    %v139 = vsel %vm127, %v112, %v113
    %v140 = vsel %vm127, %v111, %v112
    %v141 = vsel %vm127, %v110, %v111
    %v142 = vsel %vm127, %v109, %v110
    %v143 = vsel %vm127, %v124, %v109
    %v144 = vrot.slane %v93, 2
    %v145 = vrot.slane %v94, 2
    %v146 = vrot.slane %v95, 2
    %v147 = vrot.slane %v96, 2
    %v148 = vrot.slane %v97, 2
    %v149 = vrot.slane %v98, 2
    %v150 = vrot.slane %v99, 2
    %v151 = vrot.slane %v100, 2
    %v152 = vrot.slane %v101, 2
    %v153 = vrot.slane %v102, 2
    %v154 = vrot.slane %v103, 2
    %v155 = vrot.slane %v104, 2
    %v156 = vrot.slane %v105, 2
    %v157 = vrot.slane %v106, 2
    %v158 = vrot.slane %v107, 2
    %v159 = vrot.slane %v108, 2
    %vm160 = vcmp.lt.s32.totalorder %v126, 6
    %v161 = vsel %vm160, %v158, %v159
    %v162 = vsel %vm160, %v157, %v158
    %v163 = vsel %vm160, %v156, %v157
    %v164 = vsel %vm160, %v155, %v156
    %v165 = vsel %vm160, %v154, %v155
    %v166 = vsel %vm160, %v153, %v154
    %v167 = vsel %vm160, %v152, %v153
    %v168 = vsel %vm160, %v151, %v152
    %v169 = vsel %vm160, %v150, %v151
    %v170 = vsel %vm160, %v149, %v150
    %v171 = vsel %vm160, %v148, %v149
    %v172 = vsel %vm160, %v147, %v148
    %v173 = vsel %vm160, %v146, %v147
    %v174 = vsel %vm160, %v145, %v146
    %v175 = vsel %vm160, %v144, %v145
    %v176 = vsel %vm160, %v159, %v144
    %v177 = vrot.slane %v93, 3
    %v178 = vrot.slane %v94, 3
    %v179 = vrot.slane %v95, 3
    %v180 = vrot.slane %v96, 3
    %v181 = vrot.slane %v97, 3
    %v182 = vrot.slane %v98, 3
    %v183 = vrot.slane %v99, 3
    %v184 = vrot.slane %v100, 3
    %v185 = vrot.slane %v101, 3
    %v186 = vrot.slane %v102, 3
    %v187 = vrot.slane %v103, 3
    %v188 = vrot.slane %v104, 3
    %v189 = vrot.slane %v105, 3
    %v190 = vrot.slane %v106, 3
    %v191 = vrot.slane %v107, 3
    %v192 = vrot.slane %v108, 3
    %vm193 = vcmp.lt.s32.totalorder %v126, 5
    %v194 = vsel %vm193, %v191, %v192
    %v195 = vsel %vm193, %v190, %v191
    %v196 = vsel %vm193, %v189, %v190
    %v197 = vsel %vm193, %v188, %v189
    %v198 = vsel %vm193, %v187, %v188
    %v199 = vsel %vm193, %v186, %v187
    %v200 = vsel %vm193, %v185, %v186
    %v201 = vsel %vm193, %v184, %v185
    %v202 = vsel %vm193, %v183, %v184
    %v203 = vsel %vm193, %v182, %v183
    %v204 = vsel %vm193, %v181, %v182
    %v205 = vsel %vm193, %v180, %v181
    %v206 = vsel %vm193, %v179, %v180
    %v207 = vsel %vm193, %v178, %v179
    %v208 = vsel %vm193, %v177, %v178
    %v209 = vsel %vm193, %v192, %v177
    %226 = vrot.lane.b32.xlu0 %v142, 32
    %v227 = vpop.permute.xlu0 %226
    %228 = vrot.lane.b32.xlu0 %v141, 32
    %v229 = vpop.permute.xlu0 %228
    %230 = vrot.lane.b32.xlu0 %v140, 32
    %v231 = vpop.permute.xlu0 %230
    %232 = vrot.lane.b32.xlu0 %v139, 32
    %v233 = vpop.permute.xlu0 %232
    %234 = vrot.lane.b32.xlu0 %v138, 32
    %v235 = vpop.permute.xlu0 %234
    %236 = vrot.lane.b32.xlu0 %v137, 32
    %v237 = vpop.permute.xlu0 %236
    %238 = vrot.lane.b32.xlu0 %v136, 32
    %v239 = vpop.permute.xlu0 %238
    %240 = vrot.lane.b32.xlu0 %v135, 32
    %v241 = vpop.permute.xlu0 %240
    %242 = vrot.lane.b32.xlu0 %v134, 32
    %v243 = vpop.permute.xlu0 %242
    %244 = vrot.lane.b32.xlu0 %v133, 32
    %v245 = vpop.permute.xlu0 %244
    %246 = vrot.lane.b32.xlu0 %v132, 32
    %v247 = vpop.permute.xlu0 %246
    %248 = vrot.lane.b32.xlu0 %v131, 32
    %v249 = vpop.permute.xlu0 %248
    %250 = vrot.lane.b32.xlu0 %v130, 32
    %v251 = vpop.permute.xlu0 %250
    %252 = vrot.lane.b32.xlu0 %v129, 32
    %v253 = vpop.permute.xlu0 %252
    %254 = vrot.lane.b32.xlu0 %v128, 32
    %v255 = vpop.permute.xlu0 %254
    %256 = vrot.lane.b32.xlu0 %v143, 32
    %v257 = vpop.permute.xlu0 %256
    %290 = vrot.lane.b32.xlu0 %v175, 64
    %v291 = vpop.permute.xlu0 %290
    %292 = vrot.lane.b32.xlu0 %v174, 64
    %v293 = vpop.permute.xlu0 %292
    %294 = vrot.lane.b32.xlu0 %v173, 64
    %v295 = vpop.permute.xlu0 %294
    %296 = vrot.lane.b32.xlu0 %v172, 64
    %v297 = vpop.permute.xlu0 %296
    %298 = vrot.lane.b32.xlu0 %v171, 64
    %v299 = vpop.permute.xlu0 %298
    %300 = vrot.lane.b32.xlu0 %v170, 64
    %v301 = vpop.permute.xlu0 %300
    %302 = vrot.lane.b32.xlu0 %v169, 64
    %v303 = vpop.permute.xlu0 %302
    %304 = vrot.lane.b32.xlu0 %v168, 64
    %v305 = vpop.permute.xlu0 %304
    %306 = vrot.lane.b32.xlu0 %v167, 64
    %v307 = vpop.permute.xlu0 %306
    %308 = vrot.lane.b32.xlu0 %v166, 64
    %v309 = vpop.permute.xlu0 %308
    %310 = vrot.lane.b32.xlu0 %v165, 64
    %v311 = vpop.permute.xlu0 %310
    %312 = vrot.lane.b32.xlu0 %v164, 64
    %v313 = vpop.permute.xlu0 %312
    %314 = vrot.lane.b32.xlu0 %v163, 64
    %v315 = vpop.permute.xlu0 %314
    %316 = vrot.lane.b32.xlu0 %v162, 64
    %v317 = vpop.permute.xlu0 %316
    %318 = vrot.lane.b32.xlu0 %v161, 64
    %v319 = vpop.permute.xlu0 %318
    %320 = vrot.lane.b32.xlu0 %v176, 64
    %v321 = vpop.permute.xlu0 %320
    %354 = vrot.lane.b32.xlu0 %v208, 96
    %v355 = vpop.permute.xlu0 %354
    %356 = vrot.lane.b32.xlu0 %v207, 96
    %v357 = vpop.permute.xlu0 %356
    %358 = vrot.lane.b32.xlu0 %v206, 96
    %v359 = vpop.permute.xlu0 %358
    %360 = vrot.lane.b32.xlu0 %v205, 96
    %v361 = vpop.permute.xlu0 %360
    %362 = vrot.lane.b32.xlu0 %v204, 96
    %v363 = vpop.permute.xlu0 %362
    %364 = vrot.lane.b32.xlu0 %v203, 96
    %v365 = vpop.permute.xlu0 %364
    %366 = vrot.lane.b32.xlu0 %v202, 96
    %v367 = vpop.permute.xlu0 %366
    %368 = vrot.lane.b32.xlu0 %v201, 96
    %v369 = vpop.permute.xlu0 %368
    %370 = vrot.lane.b32.xlu0 %v200, 96
    %v371 = vpop.permute.xlu0 %370
    %372 = vrot.lane.b32.xlu0 %v199, 96
    %v373 = vpop.permute.xlu0 %372
    %374 = vrot.lane.b32.xlu0 %v198, 96
    %v375 = vpop.permute.xlu0 %374
    %376 = vrot.lane.b32.xlu0 %v197, 96
    %v377 = vpop.permute.xlu0 %376
    %378 = vrot.lane.b32.xlu0 %v196, 96
    %v379 = vpop.permute.xlu0 %378
    %380 = vrot.lane.b32.xlu0 %v195, 96
    %v381 = vpop.permute.xlu0 %380
    %382 = vrot.lane.b32.xlu0 %v194, 96
    %v383 = vpop.permute.xlu0 %382
    %384 = vrot.lane.b32.xlu0 %v209, 96
    %v385 = vpop.permute.xlu0 %384
    %vm402 = vcmask 261120
    %v403 = vsel %vm402, %v93, %v227
    %v404 = vsel %vm402, %v94, %v229
    %v405 = vsel %vm402, %v95, %v231
    %v406 = vsel %vm402, %v96, %v233
    %v407 = vsel %vm402, %v97, %v235
    %v408 = vsel %vm402, %v98, %v237
    %v409 = vsel %vm402, %v99, %v239
    %v410 = vsel %vm402, %v100, %v241
    %v411 = vsel %vm402, %v101, %v243
    %v412 = vsel %vm402, %v102, %v245
    %v413 = vsel %vm402, %v103, %v247
    %v414 = vsel %vm402, %v104, %v249
    %v415 = vsel %vm402, %v105, %v251
    %v416 = vsel %vm402, %v106, %v253
    %v417 = vsel %vm402, %v107, %v255
    %v418 = vsel %vm402, %v108, %v257
    %vm419 = vcmask 523264
    %v420 = vsel %vm419, %v403, %v291
    %v421 = vsel %vm419, %v404, %v293
    %v422 = vsel %vm419, %v405, %v295
    %v423 = vsel %vm419, %v406, %v297
    %v424 = vsel %vm419, %v407, %v299
    %v425 = vsel %vm419, %v408, %v301
    %v426 = vsel %vm419, %v409, %v303
    %v427 = vsel %vm419, %v410, %v305
    %v428 = vsel %vm419, %v411, %v307
    %v429 = vsel %vm419, %v412, %v309
    %v430 = vsel %vm419, %v413, %v311
    %v431 = vsel %vm419, %v414, %v313
    %v432 = vsel %vm419, %v415, %v315
    %v433 = vsel %vm419, %v416, %v317
    %v434 = vsel %vm419, %v417, %v319
    %v435 = vsel %vm419, %v418, %v321
    %vm436 = vcmask 785408
    %v437 = vsel %vm436, %v420, %v355
    %v438 = vsel %vm436, %v421, %v357
    %v439 = vsel %vm436, %v422, %v359
    %v440 = vsel %vm436, %v423, %v361
    %v441 = vsel %vm436, %v424, %v363
    %v442 = vsel %vm436, %v425, %v365
    %v443 = vsel %vm436, %v426, %v367
    %v444 = vsel %vm436, %v427, %v369
    %v445 = vsel %vm436, %v428, %v371
    %v446 = vsel %vm436, %v429, %v373
    %v447 = vsel %vm436, %v430, %v375
    %v448 = vsel %vm436, %v431, %v377
    %v449 = vsel %vm436, %v432, %v379
    %v450 = vsel %vm436, %v433, %v381
    %v451 = vsel %vm436, %v434, %v383
    %v452 = vsel %vm436, %v435, %v385
    %v453 = vpack.c.bf16 %v438, %v437
    %v454 = vpack.c.bf16 %v440, %v439
    %v455 = vpack.c.bf16 %v442, %v441
    %v456 = vpack.c.bf16 %v444, %v443
    %v457 = vpack.c.bf16 %v446, %v445
    %v458 = vpack.c.bf16 %v448, %v447
    %v459 = vpack.c.bf16 %v450, %v449
    %v460 = vpack.c.bf16 %v452, %v451
    %v461 = vld [vmem:[#allocation5] sm:$0xf]
    %v462 = vld [vmem:[#allocation5 + $0x4] sm:$0xf]
    %v463 = vld [vmem:[#allocation5 + $0x8] sm:$0xf]
    %v464 = vld [vmem:[#allocation5 + $0xc] sm:$0xf]
    %v465 = vld [vmem:[#allocation5 + $0x10] sm:$0xf]
    %v466 = vld [vmem:[#allocation5 + $0x14] sm:$0xf]
    %v467 = vld [vmem:[#allocation5 + $0x18] sm:$0xf]
    %v468 = vld [vmem:[#allocation5 + $0x1c] sm:$0xf]
    %v469 = vld [vmem:[#allocation5 + $0x20] sm:$0xf]
    %v470 = vld [vmem:[#allocation5 + $0x24] sm:$0xf]
    %v471 = vld [vmem:[#allocation5 + $0x28] sm:$0xf]
    %v472 = vld [vmem:[#allocation5 + $0x2c] sm:$0xf]
    %v473 = vld [vmem:[#allocation5 + $0x30] sm:$0xf]
    %v474 = vld [vmem:[#allocation5 + $0x34] sm:$0xf]
    %v475 = vld [vmem:[#allocation5 + $0x38] sm:$0xf]
    %v476 = vld [vmem:[#allocation5 + $0x3c] sm:$0xf]
    %v493 = vunpack.c.l.b16 %v461
    %v494 = vunpack.c.l.b16 %v462
    %v495 = vunpack.c.l.b16 %v463
    %v496 = vunpack.c.l.b16 %v464
    %v497 = vunpack.c.l.b16 %v465
    %v498 = vunpack.c.l.b16 %v466
    %v499 = vunpack.c.l.b16 %v467
    %v500 = vunpack.c.l.b16 %v468
    %v501 = vunpack.c.l.b16 %v469
    %v502 = vunpack.c.l.b16 %v470
    %v503 = vunpack.c.l.b16 %v471
    %v504 = vunpack.c.l.b16 %v472
    %v505 = vunpack.c.l.b16 %v473
    %v506 = vunpack.c.l.b16 %v474
    %v507 = vunpack.c.l.b16 %v475
    %v508 = vunpack.c.l.b16 %v476
    %v509 = vpack.c.b16 %v494, %v493
    %v510 = vpack.c.b16 %v496, %v495
    %v511 = vpack.c.b16 %v498, %v497
    %v512 = vpack.c.b16 %v500, %v499
    %v513 = vpack.c.b16 %v502, %v501
    %v514 = vpack.c.b16 %v504, %v503
    %v515 = vpack.c.b16 %v506, %v505
    %v516 = vpack.c.b16 %v508, %v507
    %525 = vmatprep.subr.bf16.mxu0 0
    %526 = vmatpush1.bf16.msra.mxu0 %v509
    %527 = vmatprep.subr.bf16.mxu0 0
    %528 = vmatpush1.bf16.msra.mxu0 %v510
    %529 = vmatprep.subr.bf16.mxu0 0
    %530 = vmatpush1.bf16.msra.mxu0 %v511
    %531 = vmatprep.subr.bf16.mxu0 0
    %532 = vmatpush1.bf16.msra.mxu0 %v512
    %533 = vmatprep.subr.bf16.mxu0 0
    %534 = vmatpush1.bf16.msra.mxu0 %v513
    %535 = vmatprep.subr.bf16.mxu0 0
    %536 = vmatpush1.bf16.msra.mxu0 %v514
    %537 = vmatprep.subr.bf16.mxu0 0
    %538 = vmatpush1.bf16.msra.mxu0 %v515
    %539 = vmatprep.subr.bf16.mxu0 0
    %540 = vmatpush1.bf16.msra.mxu0 %v516
    %541 = vmatprep.subr.bf16.mxu0 0
    %542 = vmatpush1.bf16.msra.mxu0 0
    %543 = vmatprep.subr.bf16.mxu0 0
    %544 = vmatpush1.bf16.msra.mxu0 0
    %545 = vmatprep.subr.bf16.mxu0 0
    %546 = vmatpush1.bf16.msra.mxu0 0
    %547 = vmatprep.subr.bf16.mxu0 0
    %548 = vmatpush1.bf16.msra.mxu0 0
    %549 = vmatprep.subr.bf16.mxu0 0
    %550 = vmatpush1.bf16.msra.mxu0 0
    %551 = vmatprep.subr.bf16.mxu0 0
    %552 = vmatpush1.bf16.msra.mxu0 0
    %553 = vmatprep.subr.bf16.mxu0 0
    %554 = vmatpush1.bf16.msra.mxu0 0
    %555 = vmatprep.subr.bf16.mxu0 0
    %556 = vmatpush1.bf16.msra.mxu0 0
    %557 = vmatprep.mubr.bf16.mxu0 0
    %558 = vmatmul.mubr.bf16.gmra.mrb[0].mxu0 %v453
    %v559 = vpop.f32.mrb[0].mxu0
    %v560 = vadd.f32 0.0, %v559
    %v561 = vpop.f32.mrb[0].mxu0
    %v562 = vpop.f32.mrb[0].mxu0
    %v563 = vadd.f32 0.0, %v562
    %v564 = vpop.f32.mrb[0].mxu0
    %565 = vmatprep.mubr.bf16.mxu0 0
    %566 = vmatmul.mubr.bf16.gmra.mrb[0].mxu0 %v454
    %v567 = vpop.f32.mrb[0].mxu0
    %v568 = vadd.f32 0.0, %v567
    %v569 = vpop.f32.mrb[0].mxu0
    %v570 = vpop.f32.mrb[0].mxu0
    %v571 = vadd.f32 0.0, %v570
    %v572 = vpop.f32.mrb[0].mxu0
    %573 = vmatprep.mubr.bf16.mxu0 0
    %574 = vmatmul.mubr.bf16.gmra.mrb[0].mxu0 %v455
    %v575 = vpop.f32.mrb[0].mxu0
    %v576 = vadd.f32 0.0, %v575
    %v577 = vpop.f32.mrb[0].mxu0
    %v578 = vpop.f32.mrb[0].mxu0
    %v579 = vadd.f32 0.0, %v578
    %v580 = vpop.f32.mrb[0].mxu0
    %581 = vmatprep.mubr.bf16.mxu0 0
    %582 = vmatmul.mubr.bf16.gmra.mrb[0].mxu0 %v456
    %v583 = vpop.f32.mrb[0].mxu0
    %v584 = vadd.f32 0.0, %v583
    %v585 = vpop.f32.mrb[0].mxu0
    %v586 = vpop.f32.mrb[0].mxu0
    %v587 = vadd.f32 0.0, %v586
    %v588 = vpop.f32.mrb[0].mxu0
    %589 = vmatprep.mubr.bf16.mxu0 0
    %590 = vmatmul.mubr.bf16.gmra.mrb[0].mxu0 %v457
    %v591 = vpop.f32.mrb[0].mxu0
    %v592 = vadd.f32 0.0, %v591
    %v593 = vpop.f32.mrb[0].mxu0
    %v594 = vpop.f32.mrb[0].mxu0
    %v595 = vadd.f32 0.0, %v594
    %v596 = vpop.f32.mrb[0].mxu0
    %597 = vmatprep.mubr.bf16.mxu0 0
    %598 = vmatmul.mubr.bf16.gmra.mrb[0].mxu0 %v458
    %v599 = vpop.f32.mrb[0].mxu0
    %v600 = vadd.f32 0.0, %v599
    %v601 = vpop.f32.mrb[0].mxu0
    %v602 = vpop.f32.mrb[0].mxu0
    %v603 = vadd.f32 0.0, %v602
    %v604 = vpop.f32.mrb[0].mxu0
    %605 = vmatprep.mubr.bf16.mxu0 0
    %606 = vmatmul.mubr.bf16.gmra.mrb[0].mxu0 %v459
    %v607 = vpop.f32.mrb[0].mxu0
    %v608 = vadd.f32 0.0, %v607
    %v609 = vpop.f32.mrb[0].mxu0
    %v610 = vpop.f32.mrb[0].mxu0
    %v611 = vadd.f32 0.0, %v610
    %v612 = vpop.f32.mrb[0].mxu0
    %613 = vmatprep.mubr.bf16.mxu0 0
    %614 = vmatmul.mubr.bf16.gmra.mrb[0].mxu0 %v460
    %v615 = vpop.f32.mrb[0].mxu0
    %v616 = vadd.f32 0.0, %v615
    %v617 = vpop.f32.mrb[0].mxu0
    %v618 = vpop.f32.mrb[0].mxu0
    %v619 = vadd.f32 0.0, %v618
    %v620 = vpop.f32.mrb[0].mxu0
    %621 = vdwg.mxu0
    %v622 = vld [vmem:[#allocation7] sm:$0xff]
    %v623 = vld [vmem:[#allocation7 + $0x8] sm:$0xff]
    %v624 = vadd.f32 %v560, %v622
    %v625 = vadd.f32 %v563, %v623
    %v626 = vadd.f32 %v568, %v622
    %v627 = vadd.f32 %v571, %v623
    %v628 = vadd.f32 %v576, %v622
    %v629 = vadd.f32 %v579, %v623
    %v630 = vadd.f32 %v584, %v622
    %v631 = vadd.f32 %v587, %v623
    %v632 = vadd.f32 %v592, %v622
    %v633 = vadd.f32 %v595, %v623
    %v634 = vadd.f32 %v600, %v622
    %v635 = vadd.f32 %v603, %v623
    %v636 = vadd.f32 %v608, %v622
    %v637 = vadd.f32 %v611, %v623
    %v638 = vadd.f32 %v616, %v622
    %v639 = vadd.f32 %v619, %v623
    %v640 = vmax.f32 %v624, 0.0
    %v641 = vmax.f32 %v625, 0.0
    %v642 = vmax.f32 %v626, 0.0
    %v643 = vmax.f32 %v627, 0.0
    %v644 = vmax.f32 %v628, 0.0
    %v645 = vmax.f32 %v629, 0.0
    %v646 = vmax.f32 %v630, 0.0
    %v647 = vmax.f32 %v631, 0.0
    %v648 = vmax.f32 %v632, 0.0
    %v649 = vmax.f32 %v633, 0.0
    %v650 = vmax.f32 %v634, 0.0
    %v651 = vmax.f32 %v635, 0.0
    %v652 = vmax.f32 %v636, 0.0
    %v653 = vmax.f32 %v637, 0.0
    %v654 = vmax.f32 %v638, 0.0
    %v655 = vmax.f32 %v639, 0.0
    %v656 = vmax.f32 %v640, %v641
    %v657 = vrot.slane %v656, 4
    %v658 = vmax.f32 %v656, %v657
    %v659 = vrot.slane %v658, 2
    %v660 = vmax.f32 %v658, %v659
    %v661 = vrot.slane %v660, 1
    %v662 = vmax.f32 %v660, %v661
    %v663 = vmax.f32 %v642, %v643
    %v664 = vrot.slane %v663, 4
    %v665 = vmax.f32 %v663, %v664
    %v666 = vrot.slane %v665, 2
    %v667 = vmax.f32 %v665, %v666
    %v668 = vrot.slane %v667, 1
    %v669 = vmax.f32 %v667, %v668
    %v670 = vmax.f32 %v644, %v645
    %v671 = vrot.slane %v670, 4
    %v672 = vmax.f32 %v670, %v671
    %v673 = vrot.slane %v672, 2
    %v674 = vmax.f32 %v672, %v673
    %v675 = vrot.slane %v674, 1
    %v676 = vmax.f32 %v674, %v675
    %v677 = vmax.f32 %v646, %v647
    %v678 = vrot.slane %v677, 4
    %v679 = vmax.f32 %v677, %v678
    %v680 = vrot.slane %v679, 2
    %v681 = vmax.f32 %v679, %v680
    %v682 = vrot.slane %v681, 1
    %v683 = vmax.f32 %v681, %v682
    %v684 = vmax.f32 %v648, %v649
    %v685 = vrot.slane %v684, 4
    %v686 = vmax.f32 %v684, %v685
    %v687 = vrot.slane %v686, 2
    %v688 = vmax.f32 %v686, %v687
    %v689 = vrot.slane %v688, 1
    %v690 = vmax.f32 %v688, %v689
    %v691 = vmax.f32 %v650, %v651
    %v692 = vrot.slane %v691, 4
    %v693 = vmax.f32 %v691, %v692
    %v694 = vrot.slane %v693, 2
    %v695 = vmax.f32 %v693, %v694
    %v696 = vrot.slane %v695, 1
    %v697 = vmax.f32 %v695, %v696
    %v698 = vmax.f32 %v652, %v653
    %v699 = vrot.slane %v698, 4
    %v700 = vmax.f32 %v698, %v699
    %v701 = vrot.slane %v700, 2
    %v702 = vmax.f32 %v700, %v701
    %v703 = vrot.slane %v702, 1
    %v704 = vmax.f32 %v702, %v703
    %v705 = vmax.f32 %v654, %v655
    %v706 = vrot.slane %v705, 4
    %v707 = vmax.f32 %v705, %v706
    %v708 = vrot.slane %v707, 2
    %v709 = vmax.f32 %v707, %v708
    %v710 = vrot.slane %v709, 1
    %v711 = vmax.f32 %v709, %v710
    %v712 = vld [vmem:[#allocation8] sm:$0xff]
    %v713 = vld [vmem:[#allocation8 + $0x8] sm:$0xff]
    %v714 = vld [vmem:[#allocation8 + $0x10] sm:$0xff]
    %v715 = vld [vmem:[#allocation8 + $0x18] sm:$0xff]
    %v716 = vld [vmem:[#allocation8 + $0x20] sm:$0xff]
    %v717 = vld [vmem:[#allocation8 + $0x28] sm:$0xff]
    %v718 = vld [vmem:[#allocation8 + $0x30] sm:$0xff]
    %v719 = vld [vmem:[#allocation8 + $0x38] sm:$0xff]
    %v720 = vld [vmem:[#allocation8 + $0x40] sm:$0xff]
    %v721 = vld [vmem:[#allocation8 + $0x48] sm:$0xff]
    %v722 = vld [vmem:[#allocation8 + $0x50] sm:$0xff]
    %v723 = vld [vmem:[#allocation8 + $0x58] sm:$0xff]
    %v724 = vld [vmem:[#allocation8 + $0x60] sm:$0xff]
    %v725 = vld [vmem:[#allocation8 + $0x68] sm:$0xff]
    %v726 = vld [vmem:[#allocation8 + $0x70] sm:$0xff]
    %v727 = vld [vmem:[#allocation8 + $0x78] sm:$0xff]
    %v728 = vld [vmem:[%s4] sm:$0x1]
    %v730 = vlaneseq
    %v731 = vshrl.u32 %v730, 7
    %v732 = vsub.s32 0, %v731
    %v733 = vrot.slane %v728, %v732
    %vm743 = vcmask 1041409
    %v744 = vsel %vm743, %v669, %v662
    %vm745 = vcmask 1042434
    %v746 = vsel %vm745, %v676, %v744
    %vm747 = vcmask 1043459
    %v748 = vsel %vm747, %v683, %v746
    %vm749 = vcmask 1044484
    %v750 = vsel %vm749, %v690, %v748
    %vm751 = vcmask 1045509
    %v752 = vsel %vm751, %v697, %v750
    %vm753 = vcmask 1046534
    %v754 = vsel %vm753, %v704, %v752
    %vm755 = vcmask 1047559
    %v756 = vsel %vm755, %v711, %v754
    %758 = vmatprep.subr.mxu0 0.0
    %759 = vmatpush1.msra.mxu0 %v712
    %760 = vmatprep.subr.mxu0 0.0
    %761 = vmatpush1.msra.mxu0 %v713
    %762 = vmatprep.subr.mxu0 0.0
    %763 = vmatpush1.msra.mxu0 %v714
    %764 = vmatprep.subr.mxu0 0.0
    %765 = vmatpush1.msra.mxu0 %v715
    %766 = vmatprep.subr.mxu0 0.0
    %767 = vmatpush1.msra.mxu0 %v716
    %768 = vmatprep.subr.mxu0 0.0
    %769 = vmatpush1.msra.mxu0 %v717
    %770 = vmatprep.subr.mxu0 0.0
    %771 = vmatpush1.msra.mxu0 %v718
    %772 = vmatprep.subr.mxu0 0.0
    %773 = vmatpush1.msra.mxu0 %v719
    %774 = vmatprep.subr.mxu0 0.0
    %775 = vmatpush1.msra.mxu0 %v720
    %776 = vmatprep.subr.mxu0 0.0
    %777 = vmatpush1.msra.mxu0 %v721
    %778 = vmatprep.subr.mxu0 0.0
    %779 = vmatpush1.msra.mxu0 %v722
    %780 = vmatprep.subr.mxu0 0.0
    %781 = vmatpush1.msra.mxu0 %v723
    %782 = vmatprep.subr.mxu0 0.0
    %783 = vmatpush1.msra.mxu0 %v724
    %784 = vmatprep.subr.mxu0 0.0
    %785 = vmatpush1.msra.mxu0 %v725
    %786 = vmatprep.subr.mxu0 0.0
    %787 = vmatpush1.msra.mxu0 %v726
    %788 = vmatprep.subr.mxu0 0.0
    %789 = vmatpush1.msra.mxu0 %v727
    %790 = vmatprep.subr.mxu0 0.0
    %791 = vmatpush1.msra.mxu0 0.0
    %792 = vmatprep.subr.mxu0 0.0
    %793 = vmatpush1.msra.mxu0 0.0
    %794 = vmatprep.subr.mxu0 0.0
    %795 = vmatpush1.msra.mxu0 0.0
    %796 = vmatprep.subr.mxu0 0.0
    %797 = vmatpush1.msra.mxu0 0.0
    %798 = vmatprep.subr.mxu0 0.0
    %799 = vmatpush1.msra.mxu0 0.0
    %800 = vmatprep.subr.mxu0 0.0
    %801 = vmatpush1.msra.mxu0 0.0
    %802 = vmatprep.subr.mxu0 0.0
    %803 = vmatpush1.msra.mxu0 0.0
    %804 = vmatprep.subr.mxu0 0.0
    %805 = vmatpush1.msra.mxu0 0.0
    %806 = vmatprep.subr.mxu0 0.0
    %807 = vmatpush1.msra.mxu0 0.0
    %808 = vmatprep.subr.mxu0 0.0
    %809 = vmatpush1.msra.mxu0 0.0
    %810 = vmatprep.subr.mxu0 0.0
    %811 = vmatpush1.msra.mxu0 0.0
    %812 = vmatprep.subr.mxu0 0.0
    %813 = vmatpush1.msra.mxu0 0.0
    %814 = vmatprep.subr.mxu0 0.0
    %815 = vmatpush1.msra.mxu0 0.0
    %816 = vmatprep.subr.mxu0 0.0
    %817 = vmatpush1.msra.mxu0 0.0
    %818 = vmatprep.subr.mxu0 0.0
    %819 = vmatpush1.msra.mxu0 0.0
    %820 = vmatprep.subr.mxu0 0.0
    %821 = vmatpush1.msra.mxu0 0.0
    %822 = vmatprep.mubr.f32.mxu0 0.0
    %823 = vmatmul.mubr.f32.gmra.mrb[0].mxu0 %v756
    %v824 = vpop.f32.mrb[0].mxu0
    %v825 = vadd.f32 %v733, %v824
    %v826 = vpop.f32.mrb[0].mxu0
    %827 = vdwg.mxu0
    %828 = vst [vmem:[#allocation10] sm:$0xff] %v825
    // Predicated region
    $region38: #{tpu_custom_call.1} parent=1 // pred_check
      _
    $region39: #{tpu_custom_call.1} parent=1 // pred_check_branch
      %830 = sbr.rel (0) target = $region41
    $region40: #{tpu_custom_call.1} parent=1 // pred_region
      %s832 = ssub.s32 128, 128
      %833 = vsyncadd [#allocation4], %s832
      %s835 = sshll.u32 [#allocation10], 4
      %s836 = int_to_ptr.vmem [resolvable:$true] %s835
      %838 = dma.vmem_to_hbm [thread:$0]  %s836, 128, %s5, [#allocation4]
    $region41: #{tpu_custom_call.1} parent=1 // pred_fallthru
      _
    // Predicated region
    $region42: #{tpu_custom_call.1} parent=1 // pred_check
      _
    $region43: #{tpu_custom_call.1} parent=1 // pred_check_branch
      %840 = sbr.rel (0) target = $region45
    $region44: #{tpu_custom_call.1} parent=1 // pred_region
      %841 = dma.done [#allocation4], 128
    $region45: #{tpu_custom_call.1} parent=1 // pred_fallthru
      _
    %842 = vsyncpa [#allocation3], 1
    %843 = vsyncpa [#allocation6], 1
    %844 = vsyncpa [#allocation9], 1
    %845 = vsyncpa [#allocation4], 1

</llo_original>
